<compile_context>
chip_gen: v5e
topology: v5e:2x2
jax: 0.10.0
libtpu: 0.0.40
codegen_flags: <defaults>
</compile_context>

<pallas_src>
import functools

import jax
import jax.numpy as jnp
from jax.experimental import pallas as pl
from jax.experimental.pallas import tpu as pltpu


def _round_up(x, m):
    return ((x + m - 1) // m) * m


def _cdiv(a, b):
    return (a + b - 1) // b


def _vmem_capacity_bytes():
    """Per-core VMEM capacity; conservative fallback (v7x per-TC) if unqueryable."""
    try:
        return int(pltpu.get_tpu_info().vmem_capacity_bytes)
    except Exception:
        return 64 * 1024 * 1024


def attention_mlp_kernel(x_ref, w1t_ref, b1_ref, w2t_ref, b2_ref, o_ref, *,
                         approx_sigmoid):
    """Fused sigmoid( relu(x @ W1^T + b1) @ W2^T + b2 ) for one batch tile.

    x arrives in its storage dtype and is cast to the weights' dtype in-kernel;
    MXU accumulates in f32; bias / ReLU / sigmoid run in f32.
    """
    cdt = w1t_ref.dtype
    x = x_ref[...].astype(cdt)                                          # in-kernel cast
    h = jnp.dot(x, w1t_ref[...], preferred_element_type=jnp.float32)    # (bm, Ap) f32
    h = jnp.maximum(h + b1_ref[...], 0.0)
    y = jnp.dot(h.astype(cdt), w2t_ref[...],
                preferred_element_type=jnp.float32)                     # (bm, Dp) f32
    y = y + b2_ref[...]
    if approx_sigmoid:
        s = pl.reciprocal(1.0 + jnp.exp(-y), approx=True)               # EUP exp + vrcp
    else:
        s = jax.nn.sigmoid(y)
    o_ref[...] = s.astype(o_ref.dtype)                                  # lane-dense store


def prepare_params(w1, b1, w2, b2, *, compute_dtype=jnp.bfloat16):
    """Transpose / cast / zero-pad the weights ONCE; reuse across kernel calls.

    w1: (A, D); b1: (A,); w2: (D, A); b2: (D,).  Returns a dict of prepared arrays.
    """
    A, D = w1.shape
    D_p = _round_up(D, 128)
    A_p = _round_up(A, 128)

    w1t = w1.T.astype(compute_dtype)                      # (D, A)
    w2t = w2.T.astype(compute_dtype)                      # (A, D)
    if (D_p, A_p) != (D, A):
        w1t = jnp.pad(w1t, ((0, D_p - D), (0, A_p - A)))  # (Dp, Ap)
        w2t = jnp.pad(w2t, ((0, A_p - A), (0, D_p - D)))  # (Ap, Dp)

    b1r = b1.astype(jnp.float32)
    b2r = b2.astype(jnp.float32)
    if A_p != A:
        b1r = jnp.pad(b1r, (0, A_p - A))
    if D_p != D:
        b2r = jnp.pad(b2r, (0, D_p - D))
    return {"w1t": w1t, "b1": b1r.reshape(1, A_p),
            "w2t": w2t, "b2": b2r.reshape(1, D_p)}


@functools.partial(jax.jit, static_argnames=("approx_sigmoid", "out_dtype"))
def attention_mechanism_prepared(x, w1t, b1, w2t, b2, *,
                                 approx_sigmoid=True, out_dtype=None):
    """x: (B, D) in its original dtype; w1t/b1/w2t/b2 from prepare_params()."""
    B, D = x.shape
    D_p, A_p = w1t.shape
    assert D_p == _round_up(D, 128) and w2t.shape == (A_p, D_p)

    out_dtype = x.dtype if out_dtype is None else out_dtype
    xb = jnp.dtype(x.dtype).itemsize
    cb = jnp.dtype(w1t.dtype).itemsize
    ob = jnp.dtype(out_dtype).itemsize

    # --- Budget-driven batch tiling (generation-aware VMEM capacity). ---
    vmem_cap = _vmem_capacity_bytes()
    vmem_budget = min(int(0.85 * vmem_cap), vmem_cap - 4 * 1024 * 1024)
    # Single-buffered resident weights + biases.
    fixed = 2 * D_p * A_p * cb + (A_p + D_p) * 4
    # Per-batch-row cost: double-buffered x tile + double-buffered out tile + f32 temps.
    row_bytes = 2 * D_p * xb + 2 * D_p * ob + (A_p + D_p) * 4
    avail = vmem_budget - fixed
    # TODO(synk): add a weight-tiling path (second "arbitrary" grid axis over A_p/D_p
    # with an f32 accumulator scratch) for layers whose resident weights alone exceed
    # the VMEM budget (e.g. D=A=4096); current design keeps both matrices resident.
    max_bm = max(8, min(1024, (avail // row_bytes) // 8 * 8)) if avail > 0 else 8

    B8 = _round_up(B, 8)
    n_tiles = _cdiv(B8, max_bm)
    if n_tiles < 2 and B8 >= 16:
        n_tiles = 2                      # >=2 grid steps so both v7x TCs get work
    block_m = min(max_bm, _round_up(_cdiv(B8, n_tiles), 8))   # minimal batch padding
    B_p = n_tiles * block_m

    # Pad x only when actually required.
    if (B_p, D_p) != (B, D):
        x_in = jnp.pad(x, ((0, B_p - B), (0, D_p - D)))
    else:
        x_in = x

    est = fixed + block_m * row_bytes
    vmem_limit = int(min(max(est * 5 // 4, 16 * 1024 * 1024), vmem_budget))

    cost = pl.CostEstimate(
        flops=4 * B_p * D_p * A_p,                     # two GEMMs
        transcendentals=B_p * D_p,                     # sigmoid exp
        bytes_accessed=(B_p * D_p * xb + 2 * D_p * A_p * cb
                        + (A_p + D_p) * 4 + B_p * D_p * ob))

    kernel = functools.partial(attention_mlp_kernel, approx_sigmoid=approx_sigmoid)

    out = pl.pallas_call(
        kernel,
        out_shape=jax.ShapeDtypeStruct((B_p, D_p), out_dtype),
        grid_spec=pltpu.PrefetchScalarGridSpec(
            num_scalar_prefetch=0,
            grid=(n_tiles,),
            in_specs=[
                # x tile: streamed, default double-buffered, cast in-kernel.
                pl.BlockSpec((block_m, D_p), lambda i: (i, 0)),
                # Grid-invariant operands: single VMEM copy.
                pl.BlockSpec((D_p, A_p), lambda i: (0, 0),
                             pipeline_mode=pl.Buffered(1)),   # W1^T
                pl.BlockSpec((1, A_p), lambda i: (0, 0),
                             pipeline_mode=pl.Buffered(1)),   # b1
                pl.BlockSpec((A_p, D_p), lambda i: (0, 0),
                             pipeline_mode=pl.Buffered(1)),   # W2^T
                pl.BlockSpec((1, D_p), lambda i: (0, 0),
                             pipeline_mode=pl.Buffered(1)),   # b2
            ],
            out_specs=pl.BlockSpec((block_m, D_p), lambda i: (i, 0)),
        ),
        compiler_params=pltpu.CompilerParams(
            dimension_semantics=("parallel",),     # batch axis shards across TCs
            vmem_limit_bytes=vmem_limit),
        cost_estimate=cost,
    )(x_in, w1t, b1, w2t, b2)

    # Drop batch / feature padding (padded output cols are sigmoid(0)=0.5, discarded).
    if (B_p, D_p) != (B, D):
        out = out[:B, :D]
    return out


def attention_mechanism(x, w1, b1, w2, b2, *, compute_dtype=jnp.bfloat16,
                        approx_sigmoid=True, out_dtype=None):
    """One-shot convenience wrapper. For repeated inference, call prepare_params()
    once and reuse attention_mechanism_prepared()."""
    p = prepare_params(w1, b1, w2, b2, compute_dtype=compute_dtype)
    return attention_mechanism_prepared(x, p["w1t"], p["b1"], p["w2t"], p["b2"],
                                        approx_sigmoid=approx_sigmoid,
                                        out_dtype=out_dtype)


def init_params(key, input_dim, attention_dim, dtype=jnp.float32):
    """Deterministic init mimicking PyTorch nn.Linear default (uniform +-1/sqrt(fan_in))."""
    k1, k2, k3, k4 = jax.random.split(key, 4)
    lim1 = 1.0 / jnp.sqrt(input_dim)
    lim2 = 1.0 / jnp.sqrt(attention_dim)
    w1 = jax.random.uniform(k1, (attention_dim, input_dim), dtype, -lim1, lim1)
    b1 = jax.random.uniform(k2, (attention_dim,), dtype, -lim1, lim1)
    w2 = jax.random.uniform(k3, (input_dim, attention_dim), dtype, -lim2, lim2)
    b2 = jax.random.uniform(k4, (input_dim,), dtype, -lim2, lim2)
    return w1, b1, w2, b2


if __name__ == "__main__":
    batch = 16
    input_dim = 32
    attention_dim = 16

    key = jax.random.PRNGKey(0)
    kx, kp = jax.random.split(key)
    x = jax.random.normal(kx, (batch, input_dim), jnp.float32)
    w1, b1, w2, b2 = init_params(kp, input_dim, attention_dim)

    # Pure-JAX f32 reference (same math as the PyTorch module).
    h_ref = jnp.maximum(x @ w1.T + b1, 0.0)
    y_ref = jax.nn.sigmoid(h_ref @ w2.T + b2)

    # Fast path: prepare weights once (bf16 matmuls), reuse across calls.
    params_bf16 = prepare_params(w1, b1, w2, b2, compute_dtype=jnp.bfloat16)
    out_bf16 = jax.block_until_ready(
        attention_mechanism_prepared(x, params_bf16["w1t"], params_bf16["b1"],
                                     params_bf16["w2t"], params_bf16["b2"]))
    assert out_bf16.shape == (batch, input_dim)
    assert jnp.allclose(out_bf16, y_ref, atol=3e-2, rtol=3e-2)

    # Exact f32 compute path (exact sigmoid) matches the PyTorch reference tightly.
    params_f32 = prepare_params(w1, b1, w2, b2, compute_dtype=jnp.float32)
    out_f32 = jax.block_until_ready(
        attention_mechanism_prepared(x, params_f32["w1t"], params_f32["b1"],
                                     params_f32["w2t"], params_f32["b2"],
                                     approx_sigmoid=False))
    assert out_f32.shape == (batch, input_dim)
    assert jnp.allclose(out_f32, y_ref, atol=1e-5, rtol=1e-5)

    # One-shot convenience wrapper still works.
    out_once = jax.block_until_ready(attention_mechanism(x, w1, b1, w2, b2))
    assert jnp.allclose(out_once, y_ref, atol=3e-2, rtol=3e-2)

    print("KERNEL_OK")
</pallas_src>

<mosaic_0001>
module attributes {stable_mosaic.version = 11 : i64} {
  func.func @attention_mlp_kernel(%arg0: i32, %arg1: memref<8x128xf32, #tpu.memory_space<vmem>>, %arg2: memref<128x128xbf16, #tpu.memory_space<vmem>>, %arg3: memref<1x128xf32, #tpu.memory_space<vmem>>, %arg4: memref<128x128xbf16, #tpu.memory_space<vmem>>, %arg5: memref<1x128xf32, #tpu.memory_space<vmem>>, %arg6: memref<8x128xf32, #tpu.memory_space<vmem>>) attributes {dimension_semantics = [#tpu.dimension_semantics<parallel>], iteration_bounds = array<i64: 2>, scalar_prefetch = 0 : i64, scratch_operands = 0 : i64, tpu.core_type = #tpu.core_type<tc>, window_params = [{transform_indices = @transform_0, window_bounds = array<i64: 8, 128>}, {pipeline_mode = #tpu.pipeline_mode<synchronous>, transform_indices = @transform_1, window_bounds = array<i64: 128, 128>}, {pipeline_mode = #tpu.pipeline_mode<synchronous>, transform_indices = @transform_2, window_bounds = array<i64: 1, 128>}, {pipeline_mode = #tpu.pipeline_mode<synchronous>, transform_indices = @transform_3, window_bounds = array<i64: 128, 128>}, {pipeline_mode = #tpu.pipeline_mode<synchronous>, transform_indices = @transform_4, window_bounds = array<i64: 1, 128>}, {transform_indices = @transform_5, window_bounds = array<i64: 8, 128>}]} {
    %c0 = arith.constant 0 : index
    %c0_0 = arith.constant 0 : index
    %0 = vector.load %arg1[%c0, %c0_0] : memref<8x128xf32, #tpu.memory_space<vmem>>, vector<8x128xf32>
    %1 = arith.truncf %0 : vector<8x128xf32> to vector<8x128xbf16>
    %c0_1 = arith.constant 0 : index
    %c0_2 = arith.constant 0 : index
    %2 = vector.load %arg2[%c0_1, %c0_2] : memref<128x128xbf16, #tpu.memory_space<vmem>>, vector<128x128xbf16>
    %cst = arith.constant dense<0.000000e+00> : vector<8x128xf32>
    %3 = tpu.matmul %1, %2, %cst {dimension_numbers = #tpu.dot_dimension_numbers<[1], [0], [0], [1], [0, 0, 1, 1], [], []>} : vector<8x128xbf16>, vector<128x128xbf16>, vector<8x128xf32> -> vector<8x128xf32>
    %c0_3 = arith.constant 0 : index
    %c0_4 = arith.constant 0 : index
    %4 = vector.load %arg3[%c0_3, %c0_4] : memref<1x128xf32, #tpu.memory_space<vmem>>, vector<1x128xf32>
    %5 = vector.broadcast %4 : vector<1x128xf32> to vector<8x128xf32>
    %6 = arith.addf %3, %5 : vector<8x128xf32>
    %cst_5 = arith.constant 0.000000e+00 : f32
    %7 = vector.broadcast %cst_5 : f32 to vector<8x128xf32>
    %8 = arith.maximumf %6, %7 : vector<8x128xf32>
    %9 = arith.truncf %8 : vector<8x128xf32> to vector<8x128xbf16>
    %c0_6 = arith.constant 0 : index
    %c0_7 = arith.constant 0 : index
    %10 = vector.load %arg4[%c0_6, %c0_7] : memref<128x128xbf16, #tpu.memory_space<vmem>>, vector<128x128xbf16>
    %cst_8 = arith.constant dense<0.000000e+00> : vector<8x128xf32>
    %11 = tpu.matmul %9, %10, %cst_8 {dimension_numbers = #tpu.dot_dimension_numbers<[1], [0], [0], [1], [0, 0, 1, 1], [], []>} : vector<8x128xbf16>, vector<128x128xbf16>, vector<8x128xf32> -> vector<8x128xf32>
    %c0_9 = arith.constant 0 : index
    %c0_10 = arith.constant 0 : index
    %12 = vector.load %arg5[%c0_9, %c0_10] : memref<1x128xf32, #tpu.memory_space<vmem>>, vector<1x128xf32>
    %13 = vector.broadcast %12 : vector<1x128xf32> to vector<8x128xf32>
    %14 = arith.addf %11, %13 : vector<8x128xf32>
    %cst_11 = arith.constant 0.000000e+00 : f32
    %15 = vector.broadcast %cst_11 : f32 to vector<8x128xf32>
    %16 = arith.subf %15, %14 : vector<8x128xf32>
    %17 = math.exp %16 : vector<8x128xf32>
    %cst_12 = arith.constant 1.000000e+00 : f32
    %18 = vector.broadcast %cst_12 : f32 to vector<8x128xf32>
    %19 = arith.addf %18, %17 : vector<8x128xf32>
    %20 = tpu.reciprocal %19 {approx = true} : vector<8x128xf32> -> vector<8x128xf32>
    %c0_13 = arith.constant 0 : index
    %c0_14 = arith.constant 0 : index
    %21 = vector.load %arg6[%c0_13, %c0_14] : memref<8x128xf32, #tpu.memory_space<vmem>>, vector<8x128xf32>
    tpu.vector_store %arg6[%c0_13, %c0_14], %20 {strides = array<i32>} : memref<8x128xf32, #tpu.memory_space<vmem>>, vector<8x128xf32>,
    return
  }
  func.func @transform_0(%arg0: i32) -> (i32, i32) {
    %c0_i32 = arith.constant 0 : i32
    %c0_i32_0 = arith.constant 0 : i32
    return %arg0, %c0_i32 : i32, i32
  }
  func.func @transform_1(%arg0: i32) -> (i32, i32) {
    %c0_i32 = arith.constant 0 : i32
    %c0_i32_0 = arith.constant 0 : i32
    %c0_i32_1 = arith.constant 0 : i32
    return %c0_i32, %c0_i32_0 : i32, i32
  }
  func.func @transform_2(%arg0: i32) -> (i32, i32) {
    %c0_i32 = arith.constant 0 : i32
    %c0_i32_0 = arith.constant 0 : i32
    %c0_i32_1 = arith.constant 0 : i32
    return %c0_i32, %c0_i32_0 : i32, i32
  }
  func.func @transform_3(%arg0: i32) -> (i32, i32) {
    %c0_i32 = arith.constant 0 : i32
    %c0_i32_0 = arith.constant 0 : i32
    %c0_i32_1 = arith.constant 0 : i32
    return %c0_i32, %c0_i32_0 : i32, i32
  }
  func.func @transform_4(%arg0: i32) -> (i32, i32) {
    %c0_i32 = arith.constant 0 : i32
    %c0_i32_0 = arith.constant 0 : i32
    %c0_i32_1 = arith.constant 0 : i32
    return %c0_i32, %c0_i32_0 : i32, i32
  }
  func.func @transform_5(%arg0: i32) -> (i32, i32) {
    %c0_i32 = arith.constant 0 : i32
    %c0_i32_0 = arith.constant 0 : i32
    return %arg0, %c0_i32 : i32, i32
  }
}

</mosaic_0001>

<llo_original>
// kernel: attention_mechanism_prepared.1
$region0: #{attention_mechanism_prepared.1}
  #allocation0 [shape = 'u32[]', space=smem, size = 0x4, offset = 0x4, fixed_abs, tag = 'smem constant byte address 0x4 - core index']
  #allocation1 [shape = 'u32[72,128]{1,0:T(1,128)}', space=vmem, size = 0x9000, scoped, tag = 'internal scratch']
  %s0 = inlined_call_operand.vmem [shape: f32[16,128], index: 0, kind: input, shape index: {}]
  %s1 = inlined_call_operand.hbm [shape: bf16[128,128], index: 1, kind: input, shape index: {}]
  %s2 = inlined_call_operand.vmem [shape: f32[1,128], index: 2, kind: input, shape index: {}]
  %s3 = inlined_call_operand.hbm [shape: bf16[128,128], index: 3, kind: input, shape index: {}]
  %s4 = inlined_call_operand.vmem [shape: f32[1,128], index: 4, kind: input, shape index: {}]
  %s5 = inlined_call_operand.hbm [shape: f32[16,128], index: 5, kind: output, shape index: {}]
  %s6 = sld [smem:[#allocation0]]
  $region61: #{attention_mechanism_prepared.1} parent=0
    _
  %s8 = ssub.s32 1, %s6
  %s9 = scalar_select 0, %s8, %s6
  $region1: #{attention_mechanism_prepared.1} parent=0
    #allocation2 [shape = 'u8[32768]{0}', space=vmem, size = 0x8000, scoped, tag = 'input window, operand 1, single buffered']
    #allocation3 [shape = 's32[2]{0}', space=sflag, size = 0x8, scoped, tag = 'scoped memory for attention_mechanism_prepared.1']
    #allocation4 [shape = 's32[2]{0}', space=sflag, size = 0x8, scoped, tag = 'scoped memory for attention_mechanism_prepared.1']
    #allocation5 [shape = 'u8[32768]{0}', space=vmem, size = 0x8000, scoped, tag = 'input window, operand 3, single buffered']
    #allocation6 [shape = 's32[1]{0}', space=sflag, size = 0x4, scoped, tag = 'scoped memory for attention_mechanism_prepared.1']
    #allocation7 [shape = 'u8[8192]{0}', space=vmem, size = 0x2000, scoped, tag = 'output window, operand 0']
    %10 = vsyncpa [#allocation3], 0
    %11 = vsyncpa [#allocation6], 0
    %12 = vsyncpa [#allocation4], 0
    %s13 = scalar_lea.sflag [#allocation4], 1
    %14 = vsyncpa %s13, 0
    loop: start=0, step=1, limit=4
    $region2: #{attention_mechanism_prepared.1} parent=1 // loop_pre_header
      _
    $region3: #{attention_mechanism_prepared.1} parent=1 // loop_header
      %s16 = sphi 0, %s20
      %p17 = scmp.ge.s32.totalorder %s16, 4
      %s26 = sphi 0, %s28
      %s29 = sphi 0, %s26
      %s30 = sphi 0, %s29
      %s46 = sphi 0, %s30
      %s50 = sphi 0, %s50
      %s52 = sphi 0, %s50
      %s53 = sphi 0, %s52
      %s67 = sphi 0, %s53
      %s71 = sphi 0, %s71
      %s73 = sphi 0, %s71
      %s74 = sphi 0, %s73
      %s88 = sphi 0, %s74
      %s92 = sphi 0, %s92
      %s94 = sphi 0, %s92
      %s95 = sphi 0, %s94
      %s109 = sphi 0, %s95
      %s113 = sphi 0, %s113
      %s115 = sphi 0, %s113
      %s116 = sphi 0, %s115
      %s130 = sphi 0, %s116
      %s136 = sphi 0, %s138
      %s139 = sphi 0, %s136
      %s140 = sphi 0, %s139
      %s156 = sphi 0, %s140
    $region4: #{attention_mechanism_prepared.1} parent=1 // loop_header_branch
      %19 = sbr.rel (%p17) target = $region8
    $region5: #{attention_mechanism_prepared.1} parent=1 // loop_body
      %s21 = ssub.s32 %s16, 1
      %s22 = ssub.s32 %s16, 2
      %s23 = sadd.s32 %s16, 1
      %s24 = ssub.s32 %s16, %s23
      %p25 = scmp.eq.s32.totalorder %s24, 0
      %s27 = sadd.s32 %s26, 1
      %s28 = scalar_select %p25, %s26, %s27
      %p31 = pneg %p25
      %p32 = scmp.eq.s32.totalorder %s16, 1
      %p33 = por %p31, %p32
      %p34 = scmp.ne.s32.totalorder %s26, %s29
      %p35 = scmp.eq.s32.totalorder %s16, 0
      %p36 = por %p34, %p35
      %p37 = scmp.ne.s32.totalorder %s26, %s29
      %p38 = scmp.eq.s32.totalorder %s21, 1
      %p39 = por %p37, %p38
      %p40 = scmp.ne.s32.totalorder %s29, %s30
      %p41 = scmp.eq.s32.totalorder %s21, 0
      %p42 = por %p40, %p41
      %p43 = scmp.ne.s32.totalorder %s29, %s30
      %p44 = scmp.eq.s32.totalorder %s22, 1
      %p45 = por %p43, %p44
      %p47 = scmp.ne.s32.totalorder %s30, %s46
      %p48 = scmp.eq.s32.totalorder %s22, 0
      %p49 = por %p47, %p48
      %s51 = sadd.s32 %s50, 1
      %p54 = scmp.eq.s32.totalorder %s16, 1
      %p55 = scmp.ne.s32.totalorder %s50, %s52
      %p56 = scmp.eq.s32.totalorder %s16, 0
      %p57 = por %p55, %p56
      %p58 = scmp.ne.s32.totalorder %s50, %s52
      %p59 = scmp.eq.s32.totalorder %s21, 1
      %p60 = por %p58, %p59
      %p61 = scmp.ne.s32.totalorder %s52, %s53
      %p62 = scmp.eq.s32.totalorder %s21, 0
      %p63 = por %p61, %p62
      %p64 = scmp.ne.s32.totalorder %s52, %s53
      %p65 = scmp.eq.s32.totalorder %s22, 1
      %p66 = por %p64, %p65
      %p68 = scmp.ne.s32.totalorder %s53, %s67
      %p69 = scmp.eq.s32.totalorder %s22, 0
      %p70 = por %p68, %p69
      %s72 = sadd.s32 %s71, 1
      %p75 = scmp.eq.s32.totalorder %s16, 1
      %p76 = scmp.ne.s32.totalorder %s71, %s73
      %p77 = scmp.eq.s32.totalorder %s16, 0
      %p78 = por %p76, %p77
      %p79 = scmp.ne.s32.totalorder %s71, %s73
      %p80 = scmp.eq.s32.totalorder %s21, 1
      %p81 = por %p79, %p80
      %p82 = scmp.ne.s32.totalorder %s73, %s74
      %p83 = scmp.eq.s32.totalorder %s21, 0
      %p84 = por %p82, %p83
      %p85 = scmp.ne.s32.totalorder %s73, %s74
      %p86 = scmp.eq.s32.totalorder %s22, 1
      %p87 = por %p85, %p86
      %p89 = scmp.ne.s32.totalorder %s74, %s88
      %p90 = scmp.eq.s32.totalorder %s22, 0
      %p91 = por %p89, %p90
      %s93 = sadd.s32 %s92, 1
      %p96 = scmp.eq.s32.totalorder %s16, 1
      %p97 = scmp.ne.s32.totalorder %s92, %s94
      %p98 = scmp.eq.s32.totalorder %s16, 0
      %p99 = por %p97, %p98
      %p100 = scmp.ne.s32.totalorder %s92, %s94
      %p101 = scmp.eq.s32.totalorder %s21, 1
      %p102 = por %p100, %p101
      %p103 = scmp.ne.s32.totalorder %s94, %s95
      %p104 = scmp.eq.s32.totalorder %s21, 0
      %p105 = por %p103, %p104
      %p106 = scmp.ne.s32.totalorder %s94, %s95
      %p107 = scmp.eq.s32.totalorder %s22, 1
      %p108 = por %p106, %p107
      %p110 = scmp.ne.s32.totalorder %s95, %s109
      %p111 = scmp.eq.s32.totalorder %s22, 0
      %p112 = por %p110, %p111
      %s114 = sadd.s32 %s113, 1
      %p117 = scmp.eq.s32.totalorder %s16, 1
      %p118 = scmp.ne.s32.totalorder %s113, %s115
      %p119 = scmp.eq.s32.totalorder %s16, 0
      %p120 = por %p118, %p119
      %p121 = scmp.ne.s32.totalorder %s113, %s115
      %p122 = scmp.eq.s32.totalorder %s21, 1
      %p123 = por %p121, %p122
      %p124 = scmp.ne.s32.totalorder %s115, %s116
      %p125 = scmp.eq.s32.totalorder %s21, 0
      %p126 = por %p124, %p125
      %p127 = scmp.ne.s32.totalorder %s115, %s116
      %p128 = scmp.eq.s32.totalorder %s22, 1
      %p129 = por %p127, %p128
      %p131 = scmp.ne.s32.totalorder %s116, %s130
      %p132 = scmp.eq.s32.totalorder %s22, 0
      %p133 = por %p131, %p132
      %s134 = ssub.s32 %s16, %s23
      %p135 = scmp.eq.s32.totalorder %s134, 0
      %s137 = sadd.s32 %s136, 1
      %s138 = scalar_select %p135, %s136, %s137
      %p141 = pneg %p135
      %p142 = scmp.eq.s32.totalorder %s16, 1
      %p143 = por %p141, %p142
      %p144 = scmp.ne.s32.totalorder %s136, %s139
      %p145 = scmp.eq.s32.totalorder %s16, 0
      %p146 = por %p144, %p145
      %p147 = scmp.ne.s32.totalorder %s136, %s139
      %p148 = scmp.eq.s32.totalorder %s21, 1
      %p149 = por %p147, %p148
      %p150 = scmp.ne.s32.totalorder %s139, %s140
      %p151 = scmp.eq.s32.totalorder %s21, 0
      %p152 = por %p150, %p151
      %p153 = scmp.ne.s32.totalorder %s139, %s140
      %p154 = scmp.eq.s32.totalorder %s22, 1
      %p155 = por %p153, %p154
      %p157 = scmp.ne.s32.totalorder %s140, %s156
      %p158 = scmp.eq.s32.totalorder %s22, 0
      %p159 = por %p157, %p158
      %p160 = scmp.le.s32.totalorder 1, %s16
      %p161 = scmp.lt.s32.totalorder %s16, 3
      %p162 = pnand %p160, %p161
      %p163 = pneg %p162
      // Predicated region
      $region9: #{attention_mechanism_prepared.1} parent=5 // pred_check
        _
      $region10: #{attention_mechanism_prepared.1} parent=5 // pred_check_branch
        %165 = sbr.rel (%p162) target = $region12
      $region11: #{attention_mechanism_prepared.1} parent=5 // pred_region
        %s166 = ssub.s32 %s16, 1
        // Predicated region
        $region13: #{attention_mechanism_prepared.1} parent=11 // pred_check
          %p167 = pneg %p63
        $region14: #{attention_mechanism_prepared.1} parent=11 // pred_check_branch
          %169 = sbr.rel (%p167) target = $region16
        $region15: #{attention_mechanism_prepared.1} parent=11 // pred_region
          %171 = vsyncadd [#allocation3], 0
          %s172 = sshll.u32 %s1, 4
          %s173 = int_to_ptr.hbm [resolvable:$true] %s172
          %s174 = sshll.u32 [#allocation2], 4
          %s175 = int_to_ptr.vmem [resolvable:$true] %s174
          %180 = dma.hbm_to_vmem [thread:$0]  %s173, 1024, %s175, [#allocation3], 64, 64, 4
        $region16: #{attention_mechanism_prepared.1} parent=11 // pred_fallthru
          _
        // Predicated region
        $region17: #{attention_mechanism_prepared.1} parent=11 // pred_check
          %p181 = pneg %p84
        $region18: #{attention_mechanism_prepared.1} parent=11 // pred_check_branch
          %183 = sbr.rel (%p181) target = $region20
        $region19: #{attention_mechanism_prepared.1} parent=11 // pred_region
          _
        $region20: #{attention_mechanism_prepared.1} parent=11 // pred_fallthru
          _
        // Predicated region
        $region21: #{attention_mechanism_prepared.1} parent=11 // pred_check
          %p184 = pneg %p105
        $region22: #{attention_mechanism_prepared.1} parent=11 // pred_check_branch
          %186 = sbr.rel (%p184) target = $region24
        $region23: #{attention_mechanism_prepared.1} parent=11 // pred_region
          %188 = vsyncadd [#allocation6], 0
          %s189 = sshll.u32 %s3, 4
          %s190 = int_to_ptr.hbm [resolvable:$true] %s189
          %s191 = sshll.u32 [#allocation5], 4
          %s192 = int_to_ptr.vmem [resolvable:$true] %s191
          %197 = dma.hbm_to_vmem [thread:$0]  %s190, 1024, %s192, [#allocation6], 64, 64, 4
        $region24: #{attention_mechanism_prepared.1} parent=11 // pred_fallthru
          _
        // Predicated region
        $region25: #{attention_mechanism_prepared.1} parent=11 // pred_check
          %p198 = pneg %p126
        $region26: #{attention_mechanism_prepared.1} parent=11 // pred_check_branch
          %200 = sbr.rel (%p198) target = $region28
        $region27: #{attention_mechanism_prepared.1} parent=11 // pred_region
          _
        $region28: #{attention_mechanism_prepared.1} parent=11 // pred_fallthru
          _
      $region12: #{attention_mechanism_prepared.1} parent=5 // pred_fallthru
        _
      %p201 = scmp.lt.s32.totalorder %s16, 2
      // Predicated region
      $region29: #{attention_mechanism_prepared.1} parent=5 // pred_check
        %p202 = pneg %p201
      $region30: #{attention_mechanism_prepared.1} parent=5 // pred_check_branch
        %204 = sbr.rel (%p202) target = $region32
      $region31: #{attention_mechanism_prepared.1} parent=5 // pred_region
        // Predicated region
        $region33: #{attention_mechanism_prepared.1} parent=31 // pred_check
          %p205 = pneg %p36
        $region34: #{attention_mechanism_prepared.1} parent=31 // pred_check_branch
          %207 = sbr.rel (%p205) target = $region36
        $region35: #{attention_mechanism_prepared.1} parent=31 // pred_region
          %p208 = scmp.lt.s32.totalorder %s16, 1
          %s209 = scalar_select %p208, %s16, 1
          %s210 = smul.addr %s209, 8
          %s211 = scalar_lea.vmem %s0, %s210
        $region36: #{attention_mechanism_prepared.1} parent=31 // pred_fallthru
          _
      $region32: #{attention_mechanism_prepared.1} parent=5 // pred_fallthru
        _
      %p212 = scmp.le.s32.totalorder 1, %s16
      %p213 = scmp.lt.s32.totalorder %s16, 3
      %p214 = pnand %p212, %p213
      %p215 = pneg %p214
      // Predicated region
      $region37: #{attention_mechanism_prepared.1} parent=5 // pred_check
        _
      $region38: #{attention_mechanism_prepared.1} parent=5 // pred_check_branch
        %217 = sbr.rel (%p214) target = $region40
      $region39: #{attention_mechanism_prepared.1} parent=5 // pred_region
        %s218 = ssub.s32 %s16, 1
        // Predicated region
        $region41: #{attention_mechanism_prepared.1} parent=39 // pred_check
          %p219 = pneg %p63
        $region42: #{attention_mechanism_prepared.1} parent=39 // pred_check_branch
          %221 = sbr.rel (%p219) target = $region44
        $region43: #{attention_mechanism_prepared.1} parent=39 // pred_region
          %223 = dma.done [#allocation3], 1024
        $region44: #{attention_mechanism_prepared.1} parent=39 // pred_fallthru
          _
        // Predicated region
        $region45: #{attention_mechanism_prepared.1} parent=39 // pred_check
          %p224 = pneg %p105
        $region46: #{attention_mechanism_prepared.1} parent=39 // pred_check_branch
          %226 = sbr.rel (%p224) target = $region48
        $region47: #{attention_mechanism_prepared.1} parent=39 // pred_region
          %228 = dma.done [#allocation6], 1024
        $region48: #{attention_mechanism_prepared.1} parent=39 // pred_fallthru
          _
        %p229 = scmp.lt.s32.totalorder %s21, 1
        %s230 = scalar_select %p229, %s21, 1
        %s231 = smul.addr %s230, 8
        %s232 = scalar_lea.vmem %s0, %s231
        %p233 = pneg %p42
        %p234 = pneg %p39
        %p235 = pneg %p63
        %p236 = pneg %p60
        %p237 = pneg %p84
        %p238 = pneg %p81
        %p239 = pneg %p105
        %p240 = pneg %p102
        %p241 = pneg %p126
        %p242 = pneg %p123
        %p243 = pneg %p152
        %p244 = pneg %p149
        %s245 = sand.u32 %s139, 1
        %s246 = scalar_lea.sflag [#allocation4], %s245
        %s247 = sand.u32 %s139, 1
        %s248 = smul.addr %s247, 8
        %s249 = scalar_lea.vmem [#allocation7], %s248
        %p250 = scmp.lt.s32.totalorder %s21, 1
        %s251 = scalar_select %p250, %s21, 1
        %s252 = smul.addr %s251, 8
        %s253 = scalar_lea.vmem %s0, %s252
        %v254 = vld [vmem:[%s253] sm:$0xff]
        %v255 = vpack.c.bf16 %v254, %v254
        %v256 = vld [vmem:[#allocation2] sm:$0xf]
        %v257 = vld [vmem:[#allocation2 + $0x4] sm:$0xf]
        %v258 = vld [vmem:[#allocation2 + $0x8] sm:$0xf]
        %v259 = vld [vmem:[#allocation2 + $0xc] sm:$0xf]
        %v260 = vld [vmem:[#allocation2 + $0x10] sm:$0xf]
        %v261 = vld [vmem:[#allocation2 + $0x14] sm:$0xf]
        %v262 = vld [vmem:[#allocation2 + $0x18] sm:$0xf]
        %v263 = vld [vmem:[#allocation2 + $0x1c] sm:$0xf]
        %v264 = vld [vmem:[#allocation2 + $0x20] sm:$0xf]
        %v265 = vld [vmem:[#allocation2 + $0x24] sm:$0xf]
        %v266 = vld [vmem:[#allocation2 + $0x28] sm:$0xf]
        %v267 = vld [vmem:[#allocation2 + $0x2c] sm:$0xf]
        %v268 = vld [vmem:[#allocation2 + $0x30] sm:$0xf]
        %v269 = vld [vmem:[#allocation2 + $0x34] sm:$0xf]
        %v270 = vld [vmem:[#allocation2 + $0x38] sm:$0xf]
        %v271 = vld [vmem:[#allocation2 + $0x3c] sm:$0xf]
        %v272 = vld [vmem:[%s2] sm:$0x1]
        %v274 = vperm.slane %v272, 0
        %v292 = vunpack.c.l.b16 %v256
        %v293 = vunpack.c.l.b16 %v257
        %v294 = vunpack.c.l.b16 %v258
        %v295 = vunpack.c.l.b16 %v259
        %v296 = vunpack.c.l.b16 %v260
        %v297 = vunpack.c.l.b16 %v261
        %v298 = vunpack.c.l.b16 %v262
        %v299 = vunpack.c.l.b16 %v263
        %v300 = vunpack.c.l.b16 %v264
        %v301 = vunpack.c.l.b16 %v265
        %v302 = vunpack.c.l.b16 %v266
        %v303 = vunpack.c.l.b16 %v267
        %v304 = vunpack.c.l.b16 %v268
        %v305 = vunpack.c.l.b16 %v269
        %v306 = vunpack.c.l.b16 %v270
        %v307 = vunpack.c.l.b16 %v271
        %v308 = vpack.c.b16 %v293, %v292
        %v309 = vpack.c.b16 %v295, %v294
        %v310 = vpack.c.b16 %v297, %v296
        %v311 = vpack.c.b16 %v299, %v298
        %v312 = vpack.c.b16 %v301, %v300
        %v313 = vpack.c.b16 %v303, %v302
        %v314 = vpack.c.b16 %v305, %v304
        %v315 = vpack.c.b16 %v307, %v306
        %324 = vmatpush.bf16.msra.mxu0 %v315
        %325 = vmatpush.bf16.msra.mxu0 %v314
        %326 = vmatpush.bf16.msra.mxu0 %v313
        %327 = vmatpush.bf16.msra.mxu0 %v312
        %328 = vmatpush.bf16.msra.mxu0 %v311
        %329 = vmatpush.bf16.msra.mxu0 %v310
        %330 = vmatpush.bf16.msra.mxu0 %v309
        %331 = vmatpush.bf16.msra.mxu0 %v308
        %332 = vmatmul.bf16.gmra.mxu0 %v255
        %v333 = vpop.f32.mrf.mxu0
        %v334 = vadd.f32 %v274, %v333
        %v335 = vpop.f32.mrf.mxu0
        %336 = vdwg.mxu0
        %v337 = vmax.f32 %v334, 0.0
        %v338 = vpack.c.bf16 %v337, %v337
        %v339 = vld [vmem:[#allocation5] sm:$0xf]
        %v340 = vld [vmem:[#allocation5 + $0x4] sm:$0xf]
        %v341 = vld [vmem:[#allocation5 + $0x8] sm:$0xf]
        %v342 = vld [vmem:[#allocation5 + $0xc] sm:$0xf]
        %v343 = vld [vmem:[#allocation5 + $0x10] sm:$0xf]
        %v344 = vld [vmem:[#allocation5 + $0x14] sm:$0xf]
        %v345 = vld [vmem:[#allocation5 + $0x18] sm:$0xf]
        %v346 = vld [vmem:[#allocation5 + $0x1c] sm:$0xf]
        %v347 = vld [vmem:[#allocation5 + $0x20] sm:$0xf]
        %v348 = vld [vmem:[#allocation5 + $0x24] sm:$0xf]
        %v349 = vld [vmem:[#allocation5 + $0x28] sm:$0xf]
        %v350 = vld [vmem:[#allocation5 + $0x2c] sm:$0xf]
        %v351 = vld [vmem:[#allocation5 + $0x30] sm:$0xf]
        %v352 = vld [vmem:[#allocation5 + $0x34] sm:$0xf]
        %v353 = vld [vmem:[#allocation5 + $0x38] sm:$0xf]
        %v354 = vld [vmem:[#allocation5 + $0x3c] sm:$0xf]
        %v355 = vld [vmem:[%s4] sm:$0x1]
        %v357 = vperm.slane %v355, 0
        %v375 = vunpack.c.l.b16 %v339
        %v376 = vunpack.c.l.b16 %v340
        %v377 = vunpack.c.l.b16 %v341
        %v378 = vunpack.c.l.b16 %v342
        %v379 = vunpack.c.l.b16 %v343
        %v380 = vunpack.c.l.b16 %v344
        %v381 = vunpack.c.l.b16 %v345
        %v382 = vunpack.c.l.b16 %v346
        %v383 = vunpack.c.l.b16 %v347
        %v384 = vunpack.c.l.b16 %v348
        %v385 = vunpack.c.l.b16 %v349
        %v386 = vunpack.c.l.b16 %v350
        %v387 = vunpack.c.l.b16 %v351
        %v388 = vunpack.c.l.b16 %v352
        %v389 = vunpack.c.l.b16 %v353
        %v390 = vunpack.c.l.b16 %v354
        %v391 = vpack.c.b16 %v376, %v375
        %v392 = vpack.c.b16 %v378, %v377
        %v393 = vpack.c.b16 %v380, %v379
        %v394 = vpack.c.b16 %v382, %v381
        %v395 = vpack.c.b16 %v384, %v383
        %v396 = vpack.c.b16 %v386, %v385
        %v397 = vpack.c.b16 %v388, %v387
        %v398 = vpack.c.b16 %v390, %v389
        %407 = vmatpush.bf16.msra.mxu0 %v398
        %408 = vmatpush.bf16.msra.mxu0 %v397
        %409 = vmatpush.bf16.msra.mxu0 %v396
        %410 = vmatpush.bf16.msra.mxu0 %v395
        %411 = vmatpush.bf16.msra.mxu0 %v394
        %412 = vmatpush.bf16.msra.mxu0 %v393
        %413 = vmatpush.bf16.msra.mxu0 %v392
        %414 = vmatpush.bf16.msra.mxu0 %v391
        %415 = vmatmul.bf16.gmra.mxu0 %v338
        %v416 = vpop.f32.mrf.mxu0
        %v417 = vadd.f32 %v357, %v416
        %v418 = vpop.f32.mrf.mxu0
        %419 = vdwg.mxu0
        %v420 = vsub.f32 0.0, %v417
        %v421 = vmul.f32 %v420, 1.442695
        %v422 = vpow.pop %v421
        %v423 = vadd.f32 %v422, 1.0
        %v424 = vrcp.pop %v423
        %425 = vst [vmem:[%s249] sm:$0xff] %v424
        %s426 = sand.u32 %s139, 1
        %s427 = scalar_lea.sflag [#allocation4], %s426
        %s428 = sand.u32 %s139, 1
        %s429 = smul.addr %s428, 8
        %s430 = scalar_lea.vmem [#allocation7], %s429
        // Predicated region
        $region49: #{attention_mechanism_prepared.1} parent=39 // pred_check
          %p431 = pneg %p149
        $region50: #{attention_mechanism_prepared.1} parent=39 // pred_check_branch
          %433 = sbr.rel (%p431) target = $region52
        $region51: #{attention_mechanism_prepared.1} parent=39 // pred_region
          %435 = vsyncadd %s427, 0
          %s436 = smul.addr %s21, 8
          %s437 = scalar_lea.hbm %s5, %s436
          %s439 = sshll.u32 %s430, 4
          %s440 = int_to_ptr.vmem [resolvable:$true] %s439
          %s441 = sshll.u32 %s437, 4
          %s442 = int_to_ptr.hbm [resolvable:$true] %s441
          %444 = dma.vmem_to_hbm [thread:$0]  %s440, 128, %s442, %s427
        $region52: #{attention_mechanism_prepared.1} parent=39 // pred_fallthru
          _
      $region40: #{attention_mechanism_prepared.1} parent=5 // pred_fallthru
        _
      %p445 = scmp.le.s32.totalorder 2, %s16
      // Predicated region
      $region53: #{attention_mechanism_prepared.1} parent=5 // pred_check
        %p446 = pneg %p445
      $region54: #{attention_mechanism_prepared.1} parent=5 // pred_check_branch
        %448 = sbr.rel (%p446) target = $region56
      $region55: #{attention_mechanism_prepared.1} parent=5 // pred_region
        %s449 = ssub.s32 %s16, 2
        // Predicated region
        $region57: #{attention_mechanism_prepared.1} parent=55 // pred_check
          %p450 = pneg %p155
        $region58: #{attention_mechanism_prepared.1} parent=55 // pred_check_branch
          %452 = sbr.rel (%p450) target = $region60
        $region59: #{attention_mechanism_prepared.1} parent=55 // pred_region
          %s453 = sand.u32 %s140, 1
          %s454 = scalar_lea.sflag [#allocation4], %s453
          %s455 = sand.u32 %s140, 1
          %s456 = smul.addr %s455, 8
          %s457 = scalar_lea.vmem [#allocation7], %s456
          %459 = dma.done %s454, 128
        $region60: #{attention_mechanism_prepared.1} parent=55 // pred_fallthru
          _
      $region56: #{attention_mechanism_prepared.1} parent=5 // pred_fallthru
        _
    $region6: #{attention_mechanism_prepared.1} parent=1 // loop_footer
      %s20 = sadd.s32 1, %s16
    $region7: #{attention_mechanism_prepared.1} parent=1 // loop_footer_branch
      %15 = sbr.rel target = $region3
    $region8: #{attention_mechanism_prepared.1} parent=1 // loop_exit
      _
    %460 = vsyncpa [#allocation3], 1
    %s461 = scalar_lea.sflag [#allocation3], 1
    %462 = vsyncpa %s461, 1
    %463 = vsyncpa [#allocation6], 1
    %464 = vsyncpa [#allocation4], 1
    %s465 = scalar_lea.sflag [#allocation4], 1
    %466 = vsyncpa %s465, 1

</llo_original>
